<compile_context>
chip_gen: v7x
topology: tpu7x:2x2x1
jax: 0.10.0
libtpu: 0.0.40
codegen_flags: <defaults>
</compile_context>

<pallas_src>
import functools

import jax
import jax.numpy as jnp
from jax.experimental import pallas as pl
from jax.experimental.pallas import tpu as pltpu

_LANE = 128
_BLOCK_BYTE_BUDGET = 4 * 1024 * 1024      # per streamed activation block
_FUSED_BYTE_BUDGET = 40 * 1024 * 1024     # all fused-path VMEM buffers together
_STREAM_VMEM_LIMIT = 32 * 1024 * 1024
_FUSED_VMEM_LIMIT = 48 * 1024 * 1024      # fits v7x's 64 MiB physical VMEM
_FUSED_MAX_C = 1024                       # cap for the in-kernel (C, C) band build


def _band_times_pooled(w_ref, pooled, k, pad):
    """k-tap channel conv of pooled (C, 1) using the k scalar taps from SMEM.

    The band matrix is built in-kernel from iota + scalar taps: zero HBM
    traffic, no double-buffered VMEM residency, O(k*C^2) VPU work once per
    sample (C is capped by _FUSED_MAX_C so this stays negligible).
    """
    C = pooled.shape[0]
    i_idx = jax.lax.broadcasted_iota(jnp.int32, (C, C), 0)
    c_idx = jax.lax.broadcasted_iota(jnp.int32, (C, C), 1)
    rel = c_idx - i_idx + pad                         # band[i, c] = w[rel]
    band = jnp.where(rel == 0, w_ref[0], 0.0)
    for j in range(1, k):
        band = band + jnp.where(rel == j, w_ref[j], 0.0)
    return jnp.dot(band, pooled, preferred_element_type=jnp.float32)  # (C, 1)


def _eca_fused_kernel(w_ref, x_ref, o_ref, *, k, pad, inv_hw):
    # w_ref: SMEM (k,) f32 taps; x_ref / o_ref: (1, C, HW) native dtype.
    x = x_ref[0]                                                      # (C, HW)
    pooled = jnp.sum(x, axis=-1, keepdims=True, dtype=jnp.float32) * inv_hw
    pre = _band_times_pooled(w_ref, pooled, k, pad)                   # (C, 1)
    gate = jax.nn.sigmoid(pre).astype(x.dtype)
    o_ref[0] = x * gate


def _pool_sum_kernel(x_ref, sum_ref, *, hw_total, hw_tile):
    # x_ref: (1, C, T) native dtype; sum_ref: (1, C, 1) f32, resident over HW.
    j = pl.program_id(1)

    @pl.when(j == 0)
    def _init():
        sum_ref[...] = jnp.zeros_like(sum_ref)

    x = x_ref[0]                                                      # (C, T)
    if hw_total % hw_tile != 0:
        last = pl.num_programs(1) - 1

        @pl.when(j != last)
        def _full_tile():
            sum_ref[0] += jnp.sum(x, axis=-1, keepdims=True, dtype=jnp.float32)

        @pl.when(j == last)
        def _masked_tile():  # only the partial last tile pays iota/cmp/select
            lane = jax.lax.broadcasted_iota(jnp.int32, x.shape, 1)
            xm = jnp.where(j * hw_tile + lane < hw_total, x, jnp.zeros_like(x))
            sum_ref[0] += jnp.sum(xm, axis=-1, keepdims=True, dtype=jnp.float32)
    else:
        sum_ref[0] += jnp.sum(x, axis=-1, keepdims=True, dtype=jnp.float32)


def _rescale_kernel(gate_ref, x_ref, o_ref):
    # gate_ref: (1, C, 1) x.dtype; x_ref / o_ref: (1, C, T) native dtype.
    o_ref[...] = x_ref[...] * gate_ref[...]


def _pick_hw_tile(hw, c, itemsize):
    # Budget-driven lane-dense tiles so double-buffered in+out blocks stay
    # well under every generation's scoped-VMEM limit.
    t = _BLOCK_BYTE_BUDGET // max(1, c * itemsize)
    if t >= hw:
        return hw
    # TODO(synk): block the channel axis too once C*itemsize*128 alone exceeds
    # the budget (needs conv halo handling); T is clamped at 128 lanes here.
    return max((t // _LANE) * _LANE, _LANE)


@functools.partial(jax.jit, static_argnames=("force_two_pass", "hw_tile"))
def eca_block(x, conv_weight, *, force_two_pass=False, hw_tile=None):
    """ECA forward. x: (B, C, H, W) NCHW; conv_weight: Conv1d weight (1, 1, k)."""
    B, C, H, W = x.shape
    HW = H * W
    k = int(conv_weight.shape[-1])
    assert k % 2 == 1, "ECABlock requires an odd kernel_size"
    pad = (k - 1) // 2
    w = jnp.asarray(conv_weight, jnp.float32).reshape(-1)   # (k,) taps -> SMEM
    x_flat = x.reshape(B, C, HW)
    slab = C * HW * x.dtype.itemsize

    fused_bytes = 4 * slab + 4 * C * C    # 2x in + 2x out buffers + band temp
    if (not force_two_pass and C <= _FUSED_MAX_C
            and fused_bytes <= _FUSED_BYTE_BUDGET):
        # Fused single pass: the sample stays resident in VMEM, so HBM traffic
        # is 2x size(x) instead of 3x for the two-pass path.
        out_flat = pl.pallas_call(
            functools.partial(_eca_fused_kernel, k=k, pad=pad, inv_hw=1.0 / HW),
            out_shape=jax.ShapeDtypeStruct((B, C, HW), x.dtype),
            grid=(B,),
            in_specs=[
                pl.BlockSpec(memory_space=pltpu.MemorySpace.SMEM),   # conv taps
                pl.BlockSpec((1, C, HW), lambda b: (b, 0, 0)),       # x sample
            ],
            out_specs=pl.BlockSpec((1, C, HW), lambda b: (b, 0, 0)),
            compiler_params=pltpu.CompilerParams(
                dimension_semantics=("parallel",),
                vmem_limit_bytes=_FUSED_VMEM_LIMIT),
        )(w, x_flat)
        return out_flat.reshape(B, C, H, W)

    # ---------- two-pass streaming fallback (large feature maps) ----------
    T = hw_tile if hw_tile is not None else _pick_hw_tile(HW, C, x.dtype.itemsize)
    n_hw = pl.cdiv(HW, T)

    # Pass 1: global average-pool sums; f32 accumulation directly into the
    # resident output block (constant index over the HW axis).
    pooled_sum = pl.pallas_call(
        functools.partial(_pool_sum_kernel, hw_total=HW, hw_tile=T),
        out_shape=jax.ShapeDtypeStruct((B, C, 1), jnp.float32),
        grid=(B, n_hw),
        in_specs=[pl.BlockSpec((1, C, T), lambda b, j: (b, 0, j))],
        out_specs=pl.BlockSpec((1, C, 1), lambda b, j: (b, 0, 0)),
        compiler_params=pltpu.CompilerParams(
            dimension_semantics=("parallel", "arbitrary"),
            vmem_limit_bytes=_STREAM_VMEM_LIMIT),
    )(x_flat)
    # TODO(synk): on v7x with B == 1, split the HW axis across both TensorCores
    # (partial sums + tiny combine) so pass 1 does not idle a core.

    # Tiny (B, C) channel conv + sigmoid: negligible next to the streamed passes.
    pooled = pooled_sum[..., 0] * (1.0 / HW)                 # (B, C) f32
    padded = jnp.pad(pooled, ((0, 0), (pad, pad)))
    pre = sum(w[j] * padded[:, j:j + C] for j in range(k))
    gate = jax.nn.sigmoid(pre).astype(x.dtype)[..., None]    # (B, C, 1), x.dtype

    # Pass 2: channel-wise rescale with lane-dense tiles, no per-step casts.
    out_flat = pl.pallas_call(
        _rescale_kernel,
        out_shape=jax.ShapeDtypeStruct((B, C, HW), x.dtype),
        grid=(B, n_hw),
        in_specs=[
            pl.BlockSpec((1, C, 1), lambda b, j: (b, 0, 0)),  # gate (resident per b)
            pl.BlockSpec((1, C, T), lambda b, j: (b, 0, j)),  # x tiles
        ],
        out_specs=pl.BlockSpec((1, C, T), lambda b, j: (b, 0, j)),
        compiler_params=pltpu.CompilerParams(
            dimension_semantics=("parallel", "parallel"),
            vmem_limit_bytes=_STREAM_VMEM_LIMIT),
    )(gate, x_flat)
    return out_flat.reshape(B, C, H, W)


def eca_block_ref(x, conv_weight):
    """Pure-JAX reference matching the PyTorch ECABlock forward."""
    B, C, H, W = x.shape
    k = conv_weight.shape[-1]
    pad = (k - 1) // 2
    w = conv_weight.reshape(-1)
    pooled = jnp.mean(x, axis=(2, 3))                         # (B, C)
    padded = jnp.pad(pooled, ((0, 0), (pad, pad)))            # zero padding
    pre = sum(w[j] * padded[:, j:j + C] for j in range(k))    # Conv1d, no bias
    gate = jax.nn.sigmoid(pre)
    return x * gate[:, :, None, None]


if __name__ == "__main__":
    B, C, H, W = 2, 4, 16, 16
    kernel_size = 3

    key = jax.random.PRNGKey(0)
    kx, kw = jax.random.split(key)
    x = jax.random.normal(kx, (B, C, H, W), dtype=jnp.float32)
    # Conv1d(1, 1, k, bias=False) weight, shape (out=1, in=1, k).
    conv_weight = 0.5 * jax.random.normal(kw, (1, 1, kernel_size), dtype=jnp.float32)

    # Fused single-pass path (small per-sample slab).
    out = jax.block_until_ready(eca_block(x, conv_weight))
    ref = eca_block_ref(x, conv_weight)
    assert out.shape == (B, C, H, W)
    assert jnp.allclose(out, ref, atol=1e-5, rtol=1e-5)

    # Two-pass streaming fallback, incl. masked partial last HW tile (225 % 128 != 0).
    x2 = jax.random.normal(kx, (B, C, 15, 15), dtype=jnp.float32)
    out2 = jax.block_until_ready(
        eca_block(x2, conv_weight, force_two_pass=True, hw_tile=128))
    ref2 = eca_block_ref(x2, conv_weight)
    assert jnp.allclose(out2, ref2, atol=1e-5, rtol=1e-5)

    print("KERNEL_OK")
</pallas_src>

<mosaic_0001>
module attributes {stable_mosaic.version = 11 : i64} {
  func.func @_eca_fused_kernel(%arg0: i32, %arg1: memref<3xf32, #tpu.memory_space<smem>>, %arg2: memref<1x4x256xf32, #tpu.memory_space<vmem>>, %arg3: memref<1x4x256xf32, #tpu.memory_space<vmem>>) attributes {dimension_semantics = [#tpu.dimension_semantics<parallel>], iteration_bounds = array<i64: 2>, scalar_prefetch = 0 : i64, scratch_operands = 0 : i64, tpu.core_type = #tpu.core_type<tc>, window_params = [{transform_indices = @transform_0, window_bounds = array<i64: 3>}, {transform_indices = @transform_1, window_bounds = array<i64: 1, 4, 256>}, {transform_indices = @transform_2, window_bounds = array<i64: 1, 4, 256>}]} {
    %c0 = arith.constant 0 : index
    %c0_0 = arith.constant 0 : index
    %c0_1 = arith.constant 0 : index
    %0 = vector.load %arg2[%c0, %c0_0, %c0_1] : memref<1x4x256xf32, #tpu.memory_space<vmem>>, vector<1x4x256xf32>
    %1 = vector.shape_cast %0 : vector<1x4x256xf32> to vector<4x256xf32>
    %cst = arith.constant dense<0.000000e+00> : vector<4xf32>
    %2 = vector.multi_reduction <add>, %1, %cst [1] : vector<4x256xf32> to vector<4xf32>
    %3 = vector.shape_cast %2 : vector<4xf32> to vector<4x1xf32>
    %cst_2 = arith.constant 3.906250e-03 : f32
    %4 = vector.broadcast %cst_2 : f32 to vector<4x1xf32>
    %5 = arith.mulf %3, %4 : vector<4x1xf32>
    %6 = tpu.iota {dimensions = array<i32: 0>} : vector<4x4xi32>
    %7 = tpu.iota {dimensions = array<i32: 1>} : vector<4x4xi32>
    %8 = arith.subi %7, %6 : vector<4x4xi32>
    %c1_i32 = arith.constant 1 : i32
    %9 = vector.broadcast %c1_i32 : i32 to vector<4x4xi32>
    %10 = arith.addi %8, %9 : vector<4x4xi32>
    %c0_i32 = arith.constant 0 : i32
    %11 = vector.broadcast %c0_i32 : i32 to vector<4x4xi32>
    %12 = arith.cmpi eq, %10, %11 : vector<4x4xi32>
    %c0_3 = arith.constant 0 : index
    %13 = memref.load %arg1[%c0_3] : memref<3xf32, #tpu.memory_space<smem>>
    %cst_4 = arith.constant 0.000000e+00 : f32
    %14 = vector.broadcast %13 : f32 to vector<4x4xf32>
    %15 = vector.broadcast %cst_4 : f32 to vector<4x4xf32>
    %16 = arith.select %12, %14, %15 : vector<4x4xi1>, vector<4x4xf32>
    %c1_i32_5 = arith.constant 1 : i32
    %17 = vector.broadcast %c1_i32_5 : i32 to vector<4x4xi32>
    %18 = arith.cmpi eq, %10, %17 : vector<4x4xi32>
    %c1 = arith.constant 1 : index
    %19 = memref.load %arg1[%c1] : memref<3xf32, #tpu.memory_space<smem>>
    %cst_6 = arith.constant 0.000000e+00 : f32
    %20 = vector.broadcast %19 : f32 to vector<4x4xf32>
    %21 = vector.broadcast %cst_6 : f32 to vector<4x4xf32>
    %22 = arith.select %18, %20, %21 : vector<4x4xi1>, vector<4x4xf32>
    %23 = arith.addf %16, %22 : vector<4x4xf32>
    %c2_i32 = arith.constant 2 : i32
    %24 = vector.broadcast %c2_i32 : i32 to vector<4x4xi32>
    %25 = arith.cmpi eq, %10, %24 : vector<4x4xi32>
    %c2 = arith.constant 2 : index
    %26 = memref.load %arg1[%c2] : memref<3xf32, #tpu.memory_space<smem>>
    %cst_7 = arith.constant 0.000000e+00 : f32
    %27 = vector.broadcast %26 : f32 to vector<4x4xf32>
    %28 = vector.broadcast %cst_7 : f32 to vector<4x4xf32>
    %29 = arith.select %25, %27, %28 : vector<4x4xi1>, vector<4x4xf32>
    %30 = arith.addf %23, %29 : vector<4x4xf32>
    %cst_8 = arith.constant dense<0.000000e+00> : vector<4x1xf32>
    %31 = tpu.matmul %30, %5, %cst_8 {dimension_numbers = #tpu.dot_dimension_numbers<[1], [0], [0], [1], [0, 0, 1, 1], [], []>} : vector<4x4xf32>, vector<4x1xf32>, vector<4x1xf32> -> vector<4x1xf32>
    %32 = arith.negf %31 : vector<4x1xf32>
    %33 = math.exp %32 : vector<4x1xf32>
    %cst_9 = arith.constant 1.000000e+00 : f32
    %34 = vector.broadcast %cst_9 : f32 to vector<4x1xf32>
    %35 = arith.addf %34, %33 : vector<4x1xf32>
    %36 = arith.divf %34, %35 : vector<4x1xf32>
    %37 = vector.broadcast %36 : vector<4x1xf32> to vector<4x256xf32>
    %38 = arith.mulf %1, %37 : vector<4x256xf32>
    %c0_10 = arith.constant 0 : index
    %c0_11 = arith.constant 0 : index
    %c0_12 = arith.constant 0 : index
    %39 = vector.load %arg3[%c0_10, %c0_11, %c0_12] : memref<1x4x256xf32, #tpu.memory_space<vmem>>, vector<1x4x256xf32>
    %40 = vector.shape_cast %39 : vector<1x4x256xf32> to vector<4x256xf32>
    %41 = vector.shape_cast %38 : vector<4x256xf32> to vector<1x4x256xf32>
    tpu.vector_store %arg3[%c0_10, %c0_11, %c0_12], %41 {strides = array<i32>} : memref<1x4x256xf32, #tpu.memory_space<vmem>>, vector<1x4x256xf32>,
    return
  }
  func.func @transform_0(%arg0: i32) -> i32 {
    %c0_i32 = arith.constant 0 : i32
    %c0_i32_0 = arith.constant 0 : i32
    return %c0_i32 : i32
  }
  func.func @transform_1(%arg0: i32) -> (i32, i32, i32) {
    %c0_i32 = arith.constant 0 : i32
    %c0_i32_0 = arith.constant 0 : i32
    %c0_i32_1 = arith.constant 0 : i32
    return %arg0, %c0_i32, %c0_i32_0 : i32, i32, i32
  }
  func.func @transform_2(%arg0: i32) -> (i32, i32, i32) {
    %c0_i32 = arith.constant 0 : i32
    %c0_i32_0 = arith.constant 0 : i32
    %c0_i32_1 = arith.constant 0 : i32
    return %arg0, %c0_i32, %c0_i32_0 : i32, i32, i32
  }
}

</mosaic_0001>

<llo_original>
// kernel: eca_block.1
$region0: #{eca_block.1}
  #allocation0 [shape = 'u32[]', space=smem, size = 0x4, offset = 0x4, fixed_abs, tag = 'smem constant byte address 0x4 - core index']
  #allocation1 [shape = 'u32[144,128]{1,0:T(1,128)}', space=vmem, size = 0x12000, scoped, tag = 'internal scratch']
  %s0 = inlined_call_operand.vmem [shape: f32[3], index: 0, kind: input, shape index: {}]
  %s1 = inlined_call_operand.vmem [shape: f32[2,4,256], index: 1, kind: input, shape index: {}]
  %s2 = inlined_call_operand.vmem [shape: f32[2,4,256], index: 2, kind: output, shape index: {}]
  %s3 = sld [smem:[#allocation0]]
  $region45: #{eca_block.1} parent=0
    _
  %s5 = ssub.s32 1, %s3
  %s6 = scalar_select 0, %s5, %s3
  $region1: #{eca_block.1} parent=0
    #allocation2 [shape = 'u8[512]{0}', space=smem, size = 0x200, scoped, tag = 'input window, operand 0, single buffered']
    #allocation3 [shape = 's32[2]{0}', space=sflag, size = 0x8, scoped, tag = 'scoped memory for eca_block.1']
    %7 = vsyncpa [#allocation3], 0
    loop: start=0, step=1, limit=4
    $region2: #{eca_block.1} parent=1 // loop_pre_header
      _
    $region3: #{eca_block.1} parent=1 // loop_header
      %s9 = sphi 0, %s13
      %p10 = scmp.ge.s32.totalorder %s9, 4
      %s17 = sphi 0, %s17
      %s19 = sphi 0, %s17
      %s20 = sphi 0, %s19
      %s34 = sphi 0, %s20
      %s40 = sphi 0, %s42
      %s43 = sphi 0, %s40
      %s44 = sphi 0, %s43
      %s60 = sphi 0, %s44
      %s66 = sphi 0, %s68
      %s69 = sphi 0, %s66
      %s70 = sphi 0, %s69
      %s86 = sphi 0, %s70
    $region4: #{eca_block.1} parent=1 // loop_header_branch
      %12 = sbr.rel (%p10) target = $region8
    $region5: #{eca_block.1} parent=1 // loop_body
      %s14 = ssub.s32 %s9, 1
      %s15 = ssub.s32 %s9, 2
      %s16 = sadd.s32 %s9, 1
      %s18 = sadd.s32 %s17, 1
      %p21 = scmp.eq.s32.totalorder %s9, 1
      %p22 = scmp.ne.s32.totalorder %s17, %s19
      %p23 = scmp.eq.s32.totalorder %s9, 0
      %p24 = por %p22, %p23
      %p25 = scmp.ne.s32.totalorder %s17, %s19
      %p26 = scmp.eq.s32.totalorder %s14, 1
      %p27 = por %p25, %p26
      %p28 = scmp.ne.s32.totalorder %s19, %s20
      %p29 = scmp.eq.s32.totalorder %s14, 0
      %p30 = por %p28, %p29
      %p31 = scmp.ne.s32.totalorder %s19, %s20
      %p32 = scmp.eq.s32.totalorder %s15, 1
      %p33 = por %p31, %p32
      %p35 = scmp.ne.s32.totalorder %s20, %s34
      %p36 = scmp.eq.s32.totalorder %s15, 0
      %p37 = por %p35, %p36
      %s38 = ssub.s32 %s9, %s16
      %p39 = scmp.eq.s32.totalorder %s38, 0
      %s41 = sadd.s32 %s40, 1
      %s42 = scalar_select %p39, %s40, %s41
      %p45 = pneg %p39
      %p46 = scmp.eq.s32.totalorder %s9, 1
      %p47 = por %p45, %p46
      %p48 = scmp.ne.s32.totalorder %s40, %s43
      %p49 = scmp.eq.s32.totalorder %s9, 0
      %p50 = por %p48, %p49
      %p51 = scmp.ne.s32.totalorder %s40, %s43
      %p52 = scmp.eq.s32.totalorder %s14, 1
      %p53 = por %p51, %p52
      %p54 = scmp.ne.s32.totalorder %s43, %s44
      %p55 = scmp.eq.s32.totalorder %s14, 0
      %p56 = por %p54, %p55
      %p57 = scmp.ne.s32.totalorder %s43, %s44
      %p58 = scmp.eq.s32.totalorder %s15, 1
      %p59 = por %p57, %p58
      %p61 = scmp.ne.s32.totalorder %s44, %s60
      %p62 = scmp.eq.s32.totalorder %s15, 0
      %p63 = por %p61, %p62
      %s64 = ssub.s32 %s9, %s16
      %p65 = scmp.eq.s32.totalorder %s64, 0
      %s67 = sadd.s32 %s66, 1
      %s68 = scalar_select %p65, %s66, %s67
      %p71 = pneg %p65
      %p72 = scmp.eq.s32.totalorder %s9, 1
      %p73 = por %p71, %p72
      %p74 = scmp.ne.s32.totalorder %s66, %s69
      %p75 = scmp.eq.s32.totalorder %s9, 0
      %p76 = por %p74, %p75
      %p77 = scmp.ne.s32.totalorder %s66, %s69
      %p78 = scmp.eq.s32.totalorder %s14, 1
      %p79 = por %p77, %p78
      %p80 = scmp.ne.s32.totalorder %s69, %s70
      %p81 = scmp.eq.s32.totalorder %s14, 0
      %p82 = por %p80, %p81
      %p83 = scmp.ne.s32.totalorder %s69, %s70
      %p84 = scmp.eq.s32.totalorder %s15, 1
      %p85 = por %p83, %p84
      %p87 = scmp.ne.s32.totalorder %s70, %s86
      %p88 = scmp.eq.s32.totalorder %s15, 0
      %p89 = por %p87, %p88
      %p90 = scmp.le.s32.totalorder 1, %s9
      %p91 = scmp.lt.s32.totalorder %s9, 3
      %p92 = pnand %p90, %p91
      %p93 = pneg %p92
      // Predicated region
      $region9: #{eca_block.1} parent=5 // pred_check
        _
      $region10: #{eca_block.1} parent=5 // pred_check_branch
        %95 = sbr.rel (%p92) target = $region12
      $region11: #{eca_block.1} parent=5 // pred_region
        %s96 = ssub.s32 %s9, 1
        // Predicated region
        $region13: #{eca_block.1} parent=11 // pred_check
          %p97 = pneg %p30
        $region14: #{eca_block.1} parent=11 // pred_check_branch
          %99 = sbr.rel (%p97) target = $region16
        $region15: #{eca_block.1} parent=11 // pred_region
          %s101 = ssub.s32 16, 16
          %102 = vsyncadd [#allocation3], %s101
          %s104 = sshll.u32 %s0, 4
          %s105 = int_to_ptr.vmem [resolvable:$true] %s104
          %107 = dma.vmem_to_smem %s105, 16, [#allocation2], [#allocation3]
        $region16: #{eca_block.1} parent=11 // pred_fallthru
          _
      $region12: #{eca_block.1} parent=5 // pred_fallthru
        _
      %p108 = scmp.lt.s32.totalorder %s9, 2
      // Predicated region
      $region17: #{eca_block.1} parent=5 // pred_check
        %p109 = pneg %p108
      $region18: #{eca_block.1} parent=5 // pred_check_branch
        %111 = sbr.rel (%p109) target = $region20
      $region19: #{eca_block.1} parent=5 // pred_region
        // Predicated region
        $region21: #{eca_block.1} parent=19 // pred_check
          %p112 = pneg %p50
        $region22: #{eca_block.1} parent=19 // pred_check_branch
          %114 = sbr.rel (%p112) target = $region24
        $region23: #{eca_block.1} parent=19 // pred_region
          %p115 = scmp.lt.s32.totalorder %s9, 1
          %s116 = scalar_select %p115, %s9, 1
          %s117 = smul.addr %s116, 2
          %s118 = smul.addr %s117, 4
          %s119 = scalar_lea.vmem %s1, %s118
        $region24: #{eca_block.1} parent=19 // pred_fallthru
          _
      $region20: #{eca_block.1} parent=5 // pred_fallthru
        _
      %p120 = scmp.le.s32.totalorder 1, %s9
      %p121 = scmp.lt.s32.totalorder %s9, 3
      %p122 = pnand %p120, %p121
      %p123 = pneg %p122
      // Predicated region
      $region25: #{eca_block.1} parent=5 // pred_check
        _
      $region26: #{eca_block.1} parent=5 // pred_check_branch
        %125 = sbr.rel (%p122) target = $region28
      $region27: #{eca_block.1} parent=5 // pred_region
        %s126 = ssub.s32 %s9, 1
        // Predicated region
        $region29: #{eca_block.1} parent=27 // pred_check
          %p127 = pneg %p30
        $region30: #{eca_block.1} parent=27 // pred_check_branch
          %129 = sbr.rel (%p127) target = $region32
        $region31: #{eca_block.1} parent=27 // pred_region
          %130 = dma.done [#allocation3], 16
        $region32: #{eca_block.1} parent=27 // pred_fallthru
          _
        %131 = sfence
        %p132 = pneg %p30
        %p133 = pneg %p27
        %p134 = scmp.lt.s32.totalorder %s14, 1
        %s135 = scalar_select %p134, %s14, 1
        %s136 = smul.addr %s135, 2
        %s137 = smul.addr %s136, 4
        %s138 = scalar_lea.vmem %s1, %s137
        %p139 = pneg %p56
        %p140 = pneg %p53
        %p141 = pneg %p82
        %p142 = pneg %p79
        %p143 = scmp.lt.s32.totalorder %s14, 1
        %s144 = scalar_select %p143, %s14, 1
        %s145 = smul.addr %s144, 2
        %s146 = smul.addr %s145, 4
        %s147 = scalar_lea.vmem %s2, %s146
        %p148 = scmp.lt.s32.totalorder %s14, 1
        %s149 = scalar_select %p148, %s14, 1
        %s150 = smul.addr %s149, 2
        %s151 = smul.addr %s150, 4
        %s152 = scalar_lea.vmem %s1, %s151
        %p153 = scmp.lt.s32.totalorder %s14, 1
        %s154 = scalar_select %p153, %s14, 1
        %s155 = smul.addr %s154, 2
        %s156 = smul.addr %s155, 4
        %s157 = scalar_lea.vmem %s2, %s156
        %v158 = vld [vmem:[%s152] sm:$0xff]
        %v160 = vcombine.high %v158, %v158
        %vm162 = vcmask 1043456
        %v163 = vsel %vm162, %v158, 0.0
        %v164 = vsel %vm162, %v160, 0.0
        %v165 = vadd.f32 %v163, %v164
        %166 = vadd.xlane.f32.xlu0 %v165
        %v167 = vpop.xlane.xlu0 %166
        %v168 = vmul.f32 %v167, 0.00390625
        %v169 = vlaneseq
        %v170 = vshrl.u32 %v169, 7
        %v171 = vlaneseq
        %v172 = vand.u32 %v171, 127
        %v173 = vsub.s32 %v172, %v170
        %v174 = vadd.s32 %v173, 1
        %vm175 = vcmp.eq.s32.totalorder %v174, 0
        %s176 = sld [smem:[#allocation2]]
        %v177 = vstv %s176
        %v178 = vsel %vm175, %v177, 0.0
        %vm179 = vcmp.eq.s32.totalorder %v174, 1
        %s180 = sld [smem:[#allocation2 + $0x1]]
        %v181 = vstv %s180
        %v182 = vsel %vm179, %v181, 0.0
        %v183 = vadd.f32 %v178, %v182
        %vm184 = vcmp.eq.s32.totalorder %v174, 2
        %s185 = sld [smem:[#allocation2 + $0x2]]
        %v186 = vstv %s185
        %v187 = vsel %vm184, %v186, 0.0
        %v188 = vadd.f32 %v183, %v187
        %vm189 = vcmask 31744
        %v191 = vsel %vm189, %v188, 0
        %v194 = vsel %vm162, %v168, 0
        %196 = vmatprep.subr.mxu0 0.0
        %197 = vmatpush1.msra.mxu0 %v194
        %198 = vmatprep.subr.mxu0 0.0
        %199 = vmatpush1.msra.mxu0 0.0
        %200 = vmatprep.subr.mxu0 0.0
        %201 = vmatpush1.msra.mxu0 0.0
        %202 = vmatprep.subr.mxu0 0.0
        %203 = vmatpush1.msra.mxu0 0.0
        %204 = vmatprep.subr.mxu0 0.0
        %205 = vmatpush1.msra.mxu0 0.0
        %206 = vmatprep.subr.mxu0 0.0
        %207 = vmatpush1.msra.mxu0 0.0
        %208 = vmatprep.subr.mxu0 0.0
        %209 = vmatpush1.msra.mxu0 0.0
        %210 = vmatprep.subr.mxu0 0.0
        %211 = vmatpush1.msra.mxu0 0.0
        %212 = vmatprep.subr.mxu0 0.0
        %213 = vmatpush1.msra.mxu0 0.0
        %214 = vmatprep.subr.mxu0 0.0
        %215 = vmatpush1.msra.mxu0 0.0
        %216 = vmatprep.subr.mxu0 0.0
        %217 = vmatpush1.msra.mxu0 0.0
        %218 = vmatprep.subr.mxu0 0.0
        %219 = vmatpush1.msra.mxu0 0.0
        %220 = vmatprep.subr.mxu0 0.0
        %221 = vmatpush1.msra.mxu0 0.0
        %222 = vmatprep.subr.mxu0 0.0
        %223 = vmatpush1.msra.mxu0 0.0
        %224 = vmatprep.subr.mxu0 0.0
        %225 = vmatpush1.msra.mxu0 0.0
        %226 = vmatprep.subr.mxu0 0.0
        %227 = vmatpush1.msra.mxu0 0.0
        %228 = vmatprep.subr.mxu0 0.0
        %229 = vmatpush1.msra.mxu0 0.0
        %230 = vmatprep.subr.mxu0 0.0
        %231 = vmatpush1.msra.mxu0 0.0
        %232 = vmatprep.subr.mxu0 0.0
        %233 = vmatpush1.msra.mxu0 0.0
        %234 = vmatprep.subr.mxu0 0.0
        %235 = vmatpush1.msra.mxu0 0.0
        %236 = vmatprep.subr.mxu0 0.0
        %237 = vmatpush1.msra.mxu0 0.0
        %238 = vmatprep.subr.mxu0 0.0
        %239 = vmatpush1.msra.mxu0 0.0
        %240 = vmatprep.subr.mxu0 0.0
        %241 = vmatpush1.msra.mxu0 0.0
        %242 = vmatprep.subr.mxu0 0.0
        %243 = vmatpush1.msra.mxu0 0.0
        %244 = vmatprep.subr.mxu0 0.0
        %245 = vmatpush1.msra.mxu0 0.0
        %246 = vmatprep.subr.mxu0 0.0
        %247 = vmatpush1.msra.mxu0 0.0
        %248 = vmatprep.subr.mxu0 0.0
        %249 = vmatpush1.msra.mxu0 0.0
        %250 = vmatprep.subr.mxu0 0.0
        %251 = vmatpush1.msra.mxu0 0.0
        %252 = vmatprep.subr.mxu0 0.0
        %253 = vmatpush1.msra.mxu0 0.0
        %254 = vmatprep.subr.mxu0 0.0
        %255 = vmatpush1.msra.mxu0 0.0
        %256 = vmatprep.subr.mxu0 0.0
        %257 = vmatpush1.msra.mxu0 0.0
        %258 = vmatprep.subr.mxu0 0.0
        %259 = vmatpush1.msra.mxu0 0.0
        %260 = vmatprep.mubr.f32.mxu0 0.0
        %261 = vmatmul.mubr.f32.gmra.mrb[0].mxu0 %v191
        %v262 = vpop.f32.mrb[0].mxu0
        %v263 = vadd.f32 0.0, %v262
        %v264 = vpop.f32.mrb[0].mxu0
        %265 = vdwg.mxu0
        %v266 = vxor.u32 %v263, 2147483648
        %v267 = vmul.f32 %v266, 1.442695
        %v268 = vpow.pop %v267
        %v269 = vadd.f32 %v268, 1.0
        %v270 = vrcp.pop %v269
        %v271 = vmul.f32 1.0, %v270
        %273 = vset.pattern.permute.xlu0 0
        %274 = vperm.xlu0 %273, %v271
        %v275 = vpop.permute.xlu0 %274
        %v277 = vunpack.c.l.s4 839922192
        %v278 = vunpack.c.0.s8 %v277
        %v279 = vlaneseq
        %v280 = vshrl.u32 %v279, 7
        %v281 = vsub.s32 %v278, %v280
        %v282 = vrot.slane %v275, %v281
        %v284 = vmul.f32 %v158, %v282
        %285 = vst [vmem:[%s157] sm:$0xff] %v284
        %p286 = scmp.lt.s32.totalorder %s14, 1
        %s287 = scalar_select %p286, %s14, 1
        %s288 = smul.addr %s287, 2
        %s289 = smul.addr %s288, 4
        %s290 = scalar_lea.vmem %s2, %s289
        // Predicated region
        $region33: #{eca_block.1} parent=27 // pred_check
          %p291 = pneg %p79
        $region34: #{eca_block.1} parent=27 // pred_check_branch
          %293 = sbr.rel (%p291) target = $region36
        $region35: #{eca_block.1} parent=27 // pred_region
          _
        $region36: #{eca_block.1} parent=27 // pred_fallthru
          _
      $region28: #{eca_block.1} parent=5 // pred_fallthru
        _
      %p294 = scmp.le.s32.totalorder 2, %s9
      // Predicated region
      $region37: #{eca_block.1} parent=5 // pred_check
        %p295 = pneg %p294
      $region38: #{eca_block.1} parent=5 // pred_check_branch
        %297 = sbr.rel (%p295) target = $region40
      $region39: #{eca_block.1} parent=5 // pred_region
        %s298 = ssub.s32 %s9, 2
        // Predicated region
        $region41: #{eca_block.1} parent=39 // pred_check
          %p299 = pneg %p85
        $region42: #{eca_block.1} parent=39 // pred_check_branch
          %301 = sbr.rel (%p299) target = $region44
        $region43: #{eca_block.1} parent=39 // pred_region
          %p302 = scmp.lt.s32.totalorder %s15, 1
          %s303 = scalar_select %p302, %s15, 1
          %s304 = smul.addr %s303, 2
          %s305 = smul.addr %s304, 4
          %s306 = scalar_lea.vmem %s2, %s305
        $region44: #{eca_block.1} parent=39 // pred_fallthru
          _
      $region40: #{eca_block.1} parent=5 // pred_fallthru
        _
    $region6: #{eca_block.1} parent=1 // loop_footer
      %s13 = sadd.s32 1, %s9
    $region7: #{eca_block.1} parent=1 // loop_footer_branch
      %8 = sbr.rel target = $region3
    $region8: #{eca_block.1} parent=1 // loop_exit
      _
    %307 = vsyncpa [#allocation3], 1
    %s308 = scalar_lea.sflag [#allocation3], 1
    %309 = vsyncpa %s308, 1

</llo_original>
